<compile_context>
chip_gen: v6e
topology: v6e:2x2x1
jax: 0.10.0
libtpu: 0.0.40
codegen_flags: <defaults>
</compile_context>

<pallas_src>
import math

import jax
import jax.numpy as jnp
from jax.experimental import pallas as pl
from jax.experimental.pallas import tpu as pltpu


def _round_up(x, m):
    return ((x + m - 1) // m) * m


def _vmem_limit_bytes(nbytes):
    # Raise the scoped-VMEM limit above the 16/32 MiB defaults, sized from the real
    # footprint, but never above the 64 MiB physical per-core VMEM of v7x.
    return int(min(64 * 1024 * 1024, max(32 * 1024 * 1024, 4 * int(nbytes))))


# ----------------------------------------------------------------------------
# Kernel A: build K and its element-wise powers (max_view, N, N).
# ----------------------------------------------------------------------------
def _conv_kernel_build(coor_ref, ctr_ref, rT_ref, c_ref, geo_ref, ar_ref,
                       w0_ref, b0_ref, w1_ref, b1_ref,
                       wq_ref, bq_ref, wk_ref, bk_ref, kpow_ref):
    coor = coor_ref[...]                                               # (E, 2L)

    # LocalConditionalKer with lck_structure=[H]:  relu(lin1(lin0(tanh(coor))))
    h = jnp.dot(jnp.tanh(coor), w0_ref[...],
                preferred_element_type=jnp.float32) + b0_ref[...]      # (E, H)
    lck = jnp.maximum(
        jnp.dot(h, w1_ref[...], preferred_element_type=jnp.float32) + b1_ref[...],
        0.0)                                                           # (E, 1)

    # Attention: q from per-node centre coordinates only, k from every edge.
    # (sphere_coor = coor[:, :L] + coor[:, L:] is pre-folded into wq/wk by the wrapper.)
    q_ctr = jnp.dot(ctr_ref[...], wq_ref[...],
                    preferred_element_type=jnp.float32) + bq_ref[...]  # (N, De)
    k_all = jnp.dot(coor, wk_ref[...],
                    preferred_element_type=jnp.float32) + bk_ref[...]  # (E, De)

    # scores[n, e] = q(centre n) . k(edge e); RT masks each edge to its own centre row.
    scores = jnp.einsum('nd,ed->ne', q_ctr, k_all,
                        preferred_element_type=jnp.float32)            # (N, E)

    rT = rT_ref[...]                                                   # (N, E) one-hot rows^T
    c = c_ref[...]                                                     # (E, N) one-hot cols

    # scatter-to-dense as MXU matmuls over the edge axis (no in-kernel transposes):
    lck_d = jnp.dot(rT, lck * c, preferred_element_type=jnp.float32)              # (N, N)
    alpha_d = jnp.dot(jnp.abs(scores) * rT, c, preferred_element_type=jnp.float32)  # (N, N)

    k1 = lck_d * jnp.exp(-alpha_d * geo_ref[...]) * ar_ref[...]        # (N, N)

    # element-wise powers K, K^2, ..., K^max_view (running product, static unroll)
    kpow_ref[0] = k1.astype(kpow_ref.dtype)
    kp = k1
    for v in range(1, kpow_ref.shape[0]):
        kp = kp * k1
        kpow_ref[v] = kp.astype(kpow_ref.dtype)


# ----------------------------------------------------------------------------
# Kernel B: apply the conv as stacked matmuls K^(v+1) @ X_t, lane-dense in B*F.
# ----------------------------------------------------------------------------
def _conv_apply_kernel(kp_ref, xt_ref, o_ref):
    # kp_ref: (1, N, N)   xt_ref: (N, TC)   o_ref: (1, N, TC)
    o_ref[0] = jnp.dot(kp_ref[0], xt_ref[...],
                       preferred_element_type=jnp.float32).astype(o_ref.dtype)


def _conv_apply(kpow, x, conv_dtype):
    """kpow: (V, N, N) f32, x: (B, N, F) -> (B, N, V*F)."""
    V, N, _ = kpow.shape
    B, _, F = x.shape
    BF = B * F

    # Lane-dense output: pad the (batch*feature) lane axis to a multiple of 128 and
    # tile it so a single column block stays comfortably inside VMEM at large B*F.
    BFp = _round_up(BF, 128)
    TC = min(BFp, 2048)
    BFp = _round_up(BFp, TC)
    grid_c = BFp // TC

    xt = jnp.transpose(x, (1, 0, 2)).reshape(N, BF)                    # (N, B*F)
    if BFp != BF:
        xt = jnp.pad(xt, ((0, 0), (0, BFp - BF)))

    kp_in = kpow.astype(conv_dtype)
    xt_in = xt.astype(conv_dtype)

    item = jnp.dtype(conv_dtype).itemsize
    flops = 2 * V * N * N * BFp
    bytes_accessed = V * N * N * item + N * BFp * item + V * N * BFp * 4
    block_bytes = 2 * (N * N * item + N * TC * item + N * TC * 4)      # double-buffered blocks

    y = pl.pallas_call(
        _conv_apply_kernel,
        out_shape=jax.ShapeDtypeStruct((V, N, BFp), jnp.float32),
        grid_spec=pltpu.PrefetchScalarGridSpec(
            num_scalar_prefetch=0,
            grid=(V, grid_c),
            in_specs=[
                pl.BlockSpec((1, N, N), lambda v, c: (v, 0, 0)),   # K^(v+1): grid-invariant over c
                pl.BlockSpec((N, TC), lambda v, c: (0, c)),        # x^T column block, lane-dense
            ],
            out_specs=pl.BlockSpec((1, N, TC), lambda v, c: (v, 0, c)),
        ),
        compiler_params=pltpu.CompilerParams(
            dimension_semantics=("parallel", "parallel"),
            vmem_limit_bytes=_vmem_limit_bytes(block_bytes),
        ),
        cost_estimate=pl.CostEstimate(flops=flops, transcendentals=0,
                                      bytes_accessed=bytes_accessed),
    )(kp_in, xt_in)

    # (V, N, B*F) -> (B, N, V*F): one small layout transpose in the wrapper.
    y = y[:, :, :BF].reshape(V, N, B, F)
    return jnp.transpose(y, (2, 1, 0, 3)).reshape(B, N, V * F)


# ----------------------------------------------------------------------------
# Full forward wrapper (matches CLConv.forward semantics).
# ----------------------------------------------------------------------------
def clconv_forward(x, coor, row_idx, col_idx, geodesic, angle_ratio, params, max_view,
                   *, conv_dtype=jnp.float32):
    """
    x:           (B, N, F) node features
    coor:        (E, 2*L)  local graph coordinates, E = N*M, grouped per node (centre first)
    row/col_idx: (E,)      sparse_idx rows / cols
    geodesic, angle_ratio: (N, N)
    conv_dtype:  dtype of the kernel-B matmul operands (K is built and accumulated in f32)
    returns (B, N, max_view * F)
    """
    N = geodesic.shape[0]
    E, twoL = coor.shape
    M = E // N

    # index structure for the scatter-to-dense, and per-node centre coordinates
    RT = jnp.transpose(jax.nn.one_hot(row_idx, N, dtype=jnp.float32))   # (N, E)
    C = jax.nn.one_hot(col_idx, N, dtype=jnp.float32)                   # (E, N)
    ctr_coor = coor.reshape(N, M, twoL)[:, 0, :]                        # (N, 2L)

    # fold sphere_coor = coor[:, :L] + coor[:, L:] into the attention projections
    L = twoL // 2
    P = jnp.concatenate([jnp.eye(L, dtype=jnp.float32)] * 2, axis=0)    # (2L, L)
    wq_eff = P @ params['att_wq']
    wk_eff = P @ params['att_wk']

    in_arrays = (coor, ctr_coor, RT, C, geodesic, angle_ratio,
                 params['lck_w0'], params['lck_b0'], params['lck_w1'], params['lck_b1'],
                 wq_eff, params['att_bq'], wk_eff, params['att_bk'])
    a_bytes = sum(int(a.size) * 4 for a in in_arrays) + max_view * N * N * 4

    # ---- kernel A: K and its element-wise powers (max_view, N, N) ----
    kpow = pl.pallas_call(
        _conv_kernel_build,
        out_shape=jax.ShapeDtypeStruct((max_view, N, N), jnp.float32),
        compiler_params=pltpu.CompilerParams(vmem_limit_bytes=_vmem_limit_bytes(a_bytes)),
    )(*in_arrays)

    # ---- kernel B: batched conv apply, lane-dense in B*F ----
    return _conv_apply(kpow, x, conv_dtype)


# ----------------------------------------------------------------------------
# Pure-JAX reference (mirrors the PyTorch module) for correctness checking.
# ----------------------------------------------------------------------------
def reference_forward(x, coor, rows, cols, geodesic, angle_ratio, p, max_view, N, M, L):
    lck = jnp.tanh(coor) @ p['lck_w0'] + p['lck_b0']
    lck = lck @ p['lck_w1'] + p['lck_b1']
    lck = jax.nn.relu(lck).reshape(-1)                                  # (E,)
    lck_d = jnp.zeros((N, N), jnp.float32).at[rows, cols].add(lck)

    sphere = (coor[:, :L] + coor[:, L:]).reshape(N, M, L)
    centers = sphere[:, 0, :]                                           # (N, L)
    q = centers @ p['att_wq'] + p['att_bq']                             # (N, De)
    k = sphere @ p['att_wk'] + p['att_bk']                              # (N, M, De)
    alpha = jnp.abs(jnp.einsum('nd,nmd->nm', q, k)).reshape(-1)
    alpha_d = jnp.zeros((N, N), jnp.float32).at[rows, cols].add(alpha)

    K = lck_d * jnp.exp(-alpha_d * geodesic) * angle_ratio
    outs = [jnp.einsum('nm,bmf->bnf', K ** (i + 1), x) for i in range(max_view)]
    return jnp.concatenate(outs, axis=-1)


if __name__ == "__main__":
    L = 2     # location_dim
    N = 16    # node_num
    M = 8     # neighbours per node (first neighbour == the node itself)
    F = 4     # input feature channels
    B = 2     # batch
    H = 16    # lck_structure = [H]
    De = 8    # Attention embed_dim (torch default)
    V = 3     # max_view
    E = N * M

    key = jax.random.PRNGKey(0)
    ks = jax.random.split(key, 12)

    # graph structure: node n's neighbours are (n + j) % N, j = 0 is the centre itself
    rows = jnp.repeat(jnp.arange(N), M)
    cols = (rows + jnp.tile(jnp.arange(M), N)) % N

    coor = jax.random.normal(ks[0], (E, 2 * L), jnp.float32) * 0.5
    geodesic = jax.random.uniform(ks[1], (N, N), jnp.float32)
    angle_ratio = jax.random.uniform(ks[2], (N, N), jnp.float32, 0.5, 1.5)
    x = jax.random.normal(ks[3], (B, N, F), jnp.float32)

    def linear_init(kw, kb, fan_in, fan_out):
        bound = 1.0 / math.sqrt(fan_in)
        W = jax.random.uniform(kw, (fan_in, fan_out), jnp.float32, -bound, bound)
        b = jax.random.uniform(kb, (1, fan_out), jnp.float32, -bound, bound)
        return W, b

    w0, b0 = linear_init(ks[4], ks[5], 2 * L, H)
    w1, b1 = linear_init(ks[6], ks[7], H, 1)
    wq, bq = linear_init(ks[8], ks[9], L, De)
    wk, bk = linear_init(ks[10], ks[11], L, De)
    params = dict(lck_w0=w0, lck_b0=b0, lck_w1=w1, lck_b1=b1,
                  att_wq=wq, att_bq=bq, att_wk=wk, att_bk=bk)

    # f32 run + tight check against the pure-JAX reference
    out = clconv_forward(x, coor, rows, cols, geodesic, angle_ratio, params, V)
    out = jax.block_until_ready(out)
    assert out.shape == (B, N, V * F)

    ref = reference_forward(x, coor, rows, cols, geodesic, angle_ratio, params, V, N, M, L)
    err = float(jnp.max(jnp.abs(out - ref)))
    assert jnp.allclose(out, ref, atol=1e-4, rtol=1e-3), f"f32 mismatch vs reference, max err {err}"

    # bf16 kernel-B operands (per perf review: K built in f32, matmul accumulates in f32)
    out_bf16 = clconv_forward(x, coor, rows, cols, geodesic, angle_ratio, params, V,
                              conv_dtype=jnp.bfloat16)
    out_bf16 = jax.block_until_ready(out_bf16)
    maxabs = float(jnp.max(jnp.abs(ref)))
    err_bf16 = float(jnp.max(jnp.abs(out_bf16 - ref)))
    assert err_bf16 <= 0.05 * maxabs + 0.05, (
        f"bf16 mismatch too large: {err_bf16} (|ref|max={maxabs})")

    print("KERNEL_OK")
</pallas_src>

<mosaic_0001>
module attributes {stable_mosaic.version = 11 : i64} {
  func.func @_conv_kernel_build(%arg0: memref<128x4xf32, #tpu.memory_space<vmem>>, %arg1: memref<16x4xf32, #tpu.memory_space<vmem>>, %arg2: memref<16x128xf32, #tpu.memory_space<vmem>>, %arg3: memref<128x16xf32, #tpu.memory_space<vmem>>, %arg4: memref<16x16xf32, #tpu.memory_space<vmem>>, %arg5: memref<16x16xf32, #tpu.memory_space<vmem>>, %arg6: memref<4x16xf32, #tpu.memory_space<vmem>>, %arg7: memref<1x16xf32, #tpu.memory_space<vmem>>, %arg8: memref<16x1xf32, #tpu.memory_space<vmem>>, %arg9: memref<1x1xf32, #tpu.memory_space<vmem>>, %arg10: memref<4x8xf32, #tpu.memory_space<vmem>>, %arg11: memref<1x8xf32, #tpu.memory_space<vmem>>, %arg12: memref<4x8xf32, #tpu.memory_space<vmem>>, %arg13: memref<1x8xf32, #tpu.memory_space<vmem>>, %arg14: memref<3x16x16xf32, #tpu.memory_space<vmem>>) attributes {dimension_semantics = [], scalar_prefetch = 0 : i64, scratch_operands = 0 : i64, tpu.core_type = #tpu.core_type<tc>} {
    %c0 = arith.constant 0 : index
    %c0_0 = arith.constant 0 : index
    %0 = vector.load %arg0[%c0, %c0_0] : memref<128x4xf32, #tpu.memory_space<vmem>>, vector<128x4xf32>
    %1 = math.tanh %0 : vector<128x4xf32>
    %c0_1 = arith.constant 0 : index
    %c0_2 = arith.constant 0 : index
    %2 = vector.load %arg6[%c0_1, %c0_2] : memref<4x16xf32, #tpu.memory_space<vmem>>, vector<4x16xf32>
    %cst = arith.constant dense<0.000000e+00> : vector<128x16xf32>
    %3 = tpu.matmul %1, %2, %cst {dimension_numbers = #tpu.dot_dimension_numbers<[1], [0], [0], [1], [0, 0, 1, 1], [], []>} : vector<128x4xf32>, vector<4x16xf32>, vector<128x16xf32> -> vector<128x16xf32>
    %c0_3 = arith.constant 0 : index
    %c0_4 = arith.constant 0 : index
    %4 = vector.load %arg7[%c0_3, %c0_4] : memref<1x16xf32, #tpu.memory_space<vmem>>, vector<1x16xf32>
    %5 = vector.broadcast %4 : vector<1x16xf32> to vector<128x16xf32>
    %6 = arith.addf %3, %5 : vector<128x16xf32>
    %c0_5 = arith.constant 0 : index
    %c0_6 = arith.constant 0 : index
    %7 = vector.load %arg8[%c0_5, %c0_6] : memref<16x1xf32, #tpu.memory_space<vmem>>, vector<16x1xf32>
    %cst_7 = arith.constant dense<0.000000e+00> : vector<128x1xf32>
    %8 = tpu.matmul %6, %7, %cst_7 {dimension_numbers = #tpu.dot_dimension_numbers<[1], [0], [0], [1], [0, 0, 1, 1], [], []>} : vector<128x16xf32>, vector<16x1xf32>, vector<128x1xf32> -> vector<128x1xf32>
    %c0_8 = arith.constant 0 : index
    %c0_9 = arith.constant 0 : index
    %9 = vector.load %arg9[%c0_8, %c0_9] : memref<1x1xf32, #tpu.memory_space<vmem>>, vector<1x1xf32>
    %10 = vector.broadcast %9 : vector<1x1xf32> to vector<128x1xf32>
    %11 = arith.addf %8, %10 : vector<128x1xf32>
    %cst_10 = arith.constant 0.000000e+00 : f32
    %12 = vector.broadcast %cst_10 : f32 to vector<128x1xf32>
    %13 = arith.maximumf %11, %12 : vector<128x1xf32>
    %c0_11 = arith.constant 0 : index
    %c0_12 = arith.constant 0 : index
    %14 = vector.load %arg1[%c0_11, %c0_12] : memref<16x4xf32, #tpu.memory_space<vmem>>, vector<16x4xf32>
    %c0_13 = arith.constant 0 : index
    %c0_14 = arith.constant 0 : index
    %15 = vector.load %arg10[%c0_13, %c0_14] : memref<4x8xf32, #tpu.memory_space<vmem>>, vector<4x8xf32>
    %cst_15 = arith.constant dense<0.000000e+00> : vector<16x8xf32>
    %16 = tpu.matmul %14, %15, %cst_15 {dimension_numbers = #tpu.dot_dimension_numbers<[1], [0], [0], [1], [0, 0, 1, 1], [], []>} : vector<16x4xf32>, vector<4x8xf32>, vector<16x8xf32> -> vector<16x8xf32>
    %c0_16 = arith.constant 0 : index
    %c0_17 = arith.constant 0 : index
    %17 = vector.load %arg11[%c0_16, %c0_17] : memref<1x8xf32, #tpu.memory_space<vmem>>, vector<1x8xf32>
    %18 = vector.broadcast %17 : vector<1x8xf32> to vector<16x8xf32>
    %19 = arith.addf %16, %18 : vector<16x8xf32>
    %c0_18 = arith.constant 0 : index
    %c0_19 = arith.constant 0 : index
    %20 = vector.load %arg12[%c0_18, %c0_19] : memref<4x8xf32, #tpu.memory_space<vmem>>, vector<4x8xf32>
    %cst_20 = arith.constant dense<0.000000e+00> : vector<128x8xf32>
    %21 = tpu.matmul %0, %20, %cst_20 {dimension_numbers = #tpu.dot_dimension_numbers<[1], [0], [0], [1], [0, 0, 1, 1], [], []>} : vector<128x4xf32>, vector<4x8xf32>, vector<128x8xf32> -> vector<128x8xf32>
    %c0_21 = arith.constant 0 : index
    %c0_22 = arith.constant 0 : index
    %22 = vector.load %arg13[%c0_21, %c0_22] : memref<1x8xf32, #tpu.memory_space<vmem>>, vector<1x8xf32>
    %23 = vector.broadcast %22 : vector<1x8xf32> to vector<128x8xf32>
    %24 = arith.addf %21, %23 : vector<128x8xf32>
    "tpu.trace_start"() <{level = 10 : i32, message = "nd,ed->ne"}> : () -> ()
    %cst_23 = arith.constant dense<0.000000e+00> : vector<16x128xf32>
    %25 = tpu.matmul %19, %24, %cst_23 {dimension_numbers = #tpu.dot_dimension_numbers<[1], [1], [0], [0], [0, 0, 1, 0], [], []>} : vector<16x8xf32>, vector<128x8xf32>, vector<16x128xf32> -> vector<16x128xf32>
    "tpu.trace_stop"() : () -> ()
    %c0_24 = arith.constant 0 : index
    %c0_25 = arith.constant 0 : index
    %26 = vector.load %arg2[%c0_24, %c0_25] : memref<16x128xf32, #tpu.memory_space<vmem>>, vector<16x128xf32>
    %c0_26 = arith.constant 0 : index
    %c0_27 = arith.constant 0 : index
    %27 = vector.load %arg3[%c0_26, %c0_27] : memref<128x16xf32, #tpu.memory_space<vmem>>, vector<128x16xf32>
    %28 = vector.broadcast %13 : vector<128x1xf32> to vector<128x16xf32>
    %29 = arith.mulf %28, %27 : vector<128x16xf32>
    %cst_28 = arith.constant dense<0.000000e+00> : vector<16x16xf32>
    %30 = tpu.matmul %26, %29, %cst_28 {dimension_numbers = #tpu.dot_dimension_numbers<[1], [0], [0], [1], [0, 0, 1, 1], [], []>} : vector<16x128xf32>, vector<128x16xf32>, vector<16x16xf32> -> vector<16x16xf32>
    %31 = math.absf %25 : vector<16x128xf32>
    %32 = arith.mulf %31, %26 : vector<16x128xf32>
    %cst_29 = arith.constant dense<0.000000e+00> : vector<16x16xf32>
    %33 = tpu.matmul %32, %27, %cst_29 {dimension_numbers = #tpu.dot_dimension_numbers<[1], [0], [0], [1], [0, 0, 1, 1], [], []>} : vector<16x128xf32>, vector<128x16xf32>, vector<16x16xf32> -> vector<16x16xf32>
    %cst_30 = arith.constant 0.000000e+00 : f32
    %34 = vector.broadcast %cst_30 : f32 to vector<16x16xf32>
    %35 = arith.subf %34, %33 : vector<16x16xf32>
    %c0_31 = arith.constant 0 : index
    %c0_32 = arith.constant 0 : index
    %36 = vector.load %arg4[%c0_31, %c0_32] : memref<16x16xf32, #tpu.memory_space<vmem>>, vector<16x16xf32>
    %37 = arith.mulf %35, %36 : vector<16x16xf32>
    %38 = math.exp %37 : vector<16x16xf32>
    %39 = arith.mulf %30, %38 : vector<16x16xf32>
    %c0_33 = arith.constant 0 : index
    %c0_34 = arith.constant 0 : index
    %40 = vector.load %arg5[%c0_33, %c0_34] : memref<16x16xf32, #tpu.memory_space<vmem>>, vector<16x16xf32>
    %41 = arith.mulf %39, %40 : vector<16x16xf32>
    %c0_35 = arith.constant 0 : index
    %c0_36 = arith.constant 0 : index
    %c0_37 = arith.constant 0 : index
    %42 = vector.load %arg14[%c0_35, %c0_36, %c0_37] : memref<3x16x16xf32, #tpu.memory_space<vmem>>, vector<1x16x16xf32>
    %43 = vector.shape_cast %42 : vector<1x16x16xf32> to vector<16x16xf32>
    %44 = vector.shape_cast %41 : vector<16x16xf32> to vector<1x16x16xf32>
    tpu.vector_store %arg14[%c0_35, %c0_36, %c0_37], %44 {strides = array<i32>} : memref<3x16x16xf32, #tpu.memory_space<vmem>>, vector<1x16x16xf32>,
    %45 = arith.mulf %41, %41 : vector<16x16xf32>
    %c1 = arith.constant 1 : index
    %c0_38 = arith.constant 0 : index
    %c0_39 = arith.constant 0 : index
    %46 = vector.load %arg14[%c1, %c0_38, %c0_39] : memref<3x16x16xf32, #tpu.memory_space<vmem>>, vector<1x16x16xf32>
    %47 = vector.shape_cast %46 : vector<1x16x16xf32> to vector<16x16xf32>
    %48 = vector.shape_cast %45 : vector<16x16xf32> to vector<1x16x16xf32>
    tpu.vector_store %arg14[%c1, %c0_38, %c0_39], %48 {strides = array<i32>} : memref<3x16x16xf32, #tpu.memory_space<vmem>>, vector<1x16x16xf32>,
    %49 = arith.mulf %45, %41 : vector<16x16xf32>
    %c2 = arith.constant 2 : index
    %c0_40 = arith.constant 0 : index
    %c0_41 = arith.constant 0 : index
    %50 = vector.load %arg14[%c2, %c0_40, %c0_41] : memref<3x16x16xf32, #tpu.memory_space<vmem>>, vector<1x16x16xf32>
    %51 = vector.shape_cast %50 : vector<1x16x16xf32> to vector<16x16xf32>
    %52 = vector.shape_cast %49 : vector<16x16xf32> to vector<1x16x16xf32>
    tpu.vector_store %arg14[%c2, %c0_40, %c0_41], %52 {strides = array<i32>} : memref<3x16x16xf32, #tpu.memory_space<vmem>>, vector<1x16x16xf32>,
    return
  }
}

</mosaic_0001>

<llo_original>
// kernel: tpu_custom_call.1
$region0: #{tpu_custom_call.1}
  #allocation0 [shape = 'u32[]', space=smem, size = 0x4, offset = 0x4, fixed_abs, tag = 'smem constant byte address 0x4 - core index']
  #allocation1 [shape = 'u32[144,128]{1,0:T(1,128)}', space=vmem, size = 0x12000, scoped, tag = 'internal scratch']
  #allocation2 [shape = 'f32[1,1]{1,0:T(1,128)S(1)}', space=vmem, size = 0x200, scoped, tag = 'scoped memory for tpu_custom_call.1']
  %s0 = inlined_call_operand.vmem [shape: f32[128,4], index: 0, kind: input, shape index: {}]
  %s1 = inlined_call_operand.vmem [shape: f32[16,4], index: 1, kind: input, shape index: {}]
  %s2 = inlined_call_operand.vmem [shape: f32[16,128], index: 2, kind: input, shape index: {}]
  %s3 = inlined_call_operand.vmem [shape: f32[128,16], index: 3, kind: input, shape index: {}]
  %s4 = inlined_call_operand.vmem [shape: f32[16,16], index: 4, kind: input, shape index: {}]
  %s5 = inlined_call_operand.vmem [shape: f32[16,16], index: 5, kind: input, shape index: {}]
  %s6 = inlined_call_operand.vmem [shape: f32[4,16], index: 6, kind: input, shape index: {}]
  %s7 = inlined_call_operand.vmem [shape: f32[1,16], index: 7, kind: input, shape index: {}]
  %s8 = inlined_call_operand.vmem [shape: f32[16,1], index: 8, kind: input, shape index: {}]
  %s9 = inlined_call_operand.<no memory space> [shape: f32[1,1], index: 9, kind: input, shape index: {}]
  %s10 = inlined_call_operand.vmem [shape: f32[4,8], index: 10, kind: input, shape index: {}]
  %s11 = inlined_call_operand.vmem [shape: f32[1,8], index: 11, kind: input, shape index: {}]
  %s12 = inlined_call_operand.vmem [shape: f32[4,8], index: 12, kind: input, shape index: {}]
  %s13 = inlined_call_operand.vmem [shape: f32[1,8], index: 13, kind: input, shape index: {}]
  %s14 = inlined_call_operand.hbm [shape: f32[3,16,16], index: 14, kind: output, shape index: {}]
  %s15 = sld [smem:[#allocation0]]
  $region66: #{tpu_custom_call.1} parent=0
    _
  %s17 = ssub.s32 1, %s15
  %s18 = scalar_select 0, %s17, %s15
  %v19 = vstv %s9
  %20 = vst [vmem:[#allocation2] sm:$0x1] %v19
  $region1: #{tpu_custom_call.1} parent=0
    #allocation3 [shape = 'u8[24576]{0}', space=vmem, size = 0x6000, scoped, tag = 'output window, operand 0, single buffered']
    #allocation4 [shape = 's32[1]{0}', space=sflag, size = 0x4, scoped, tag = 'scoped memory for tpu_custom_call.1']
    %21 = vsyncpa [#allocation4], 0
    // Predicated region
    $region2: #{tpu_custom_call.1} parent=1 // pred_check
      _
    $region3: #{tpu_custom_call.1} parent=1 // pred_check_branch
      %23 = sbr.rel (0) target = $region5
    $region4: #{tpu_custom_call.1} parent=1 // pred_region
      _
    $region5: #{tpu_custom_call.1} parent=1 // pred_fallthru
      _
    // Predicated region
    $region6: #{tpu_custom_call.1} parent=1 // pred_check
      _
    $region7: #{tpu_custom_call.1} parent=1 // pred_check_branch
      %25 = sbr.rel (0) target = $region9
    $region8: #{tpu_custom_call.1} parent=1 // pred_region
      _
    $region9: #{tpu_custom_call.1} parent=1 // pred_fallthru
      _
    // Predicated region
    $region10: #{tpu_custom_call.1} parent=1 // pred_check
      _
    $region11: #{tpu_custom_call.1} parent=1 // pred_check_branch
      %27 = sbr.rel (0) target = $region13
    $region12: #{tpu_custom_call.1} parent=1 // pred_region
      _
    $region13: #{tpu_custom_call.1} parent=1 // pred_fallthru
      _
    // Predicated region
    $region14: #{tpu_custom_call.1} parent=1 // pred_check
      _
    $region15: #{tpu_custom_call.1} parent=1 // pred_check_branch
      %29 = sbr.rel (0) target = $region17
    $region16: #{tpu_custom_call.1} parent=1 // pred_region
      _
    $region17: #{tpu_custom_call.1} parent=1 // pred_fallthru
      _
    // Predicated region
    $region18: #{tpu_custom_call.1} parent=1 // pred_check
      _
    $region19: #{tpu_custom_call.1} parent=1 // pred_check_branch
      %31 = sbr.rel (0) target = $region21
    $region20: #{tpu_custom_call.1} parent=1 // pred_region
      _
    $region21: #{tpu_custom_call.1} parent=1 // pred_fallthru
      _
    // Predicated region
    $region22: #{tpu_custom_call.1} parent=1 // pred_check
      _
    $region23: #{tpu_custom_call.1} parent=1 // pred_check_branch
      %33 = sbr.rel (0) target = $region25
    $region24: #{tpu_custom_call.1} parent=1 // pred_region
      _
    $region25: #{tpu_custom_call.1} parent=1 // pred_fallthru
      _
    // Predicated region
    $region26: #{tpu_custom_call.1} parent=1 // pred_check
      _
    $region27: #{tpu_custom_call.1} parent=1 // pred_check_branch
      %35 = sbr.rel (0) target = $region29
    $region28: #{tpu_custom_call.1} parent=1 // pred_region
      _
    $region29: #{tpu_custom_call.1} parent=1 // pred_fallthru
      _
    // Predicated region
    $region30: #{tpu_custom_call.1} parent=1 // pred_check
      _
    $region31: #{tpu_custom_call.1} parent=1 // pred_check_branch
      %37 = sbr.rel (0) target = $region33
    $region32: #{tpu_custom_call.1} parent=1 // pred_region
      _
    $region33: #{tpu_custom_call.1} parent=1 // pred_fallthru
      _
    // Predicated region
    $region34: #{tpu_custom_call.1} parent=1 // pred_check
      _
    $region35: #{tpu_custom_call.1} parent=1 // pred_check_branch
      %39 = sbr.rel (0) target = $region37
    $region36: #{tpu_custom_call.1} parent=1 // pred_region
      _
    $region37: #{tpu_custom_call.1} parent=1 // pred_fallthru
      _
    // Predicated region
    $region38: #{tpu_custom_call.1} parent=1 // pred_check
      _
    $region39: #{tpu_custom_call.1} parent=1 // pred_check_branch
      %41 = sbr.rel (0) target = $region41
    $region40: #{tpu_custom_call.1} parent=1 // pred_region
      _
    $region41: #{tpu_custom_call.1} parent=1 // pred_fallthru
      _
    // Predicated region
    $region42: #{tpu_custom_call.1} parent=1 // pred_check
      _
    $region43: #{tpu_custom_call.1} parent=1 // pred_check_branch
      %43 = sbr.rel (0) target = $region45
    $region44: #{tpu_custom_call.1} parent=1 // pred_region
      _
    $region45: #{tpu_custom_call.1} parent=1 // pred_fallthru
      _
    // Predicated region
    $region46: #{tpu_custom_call.1} parent=1 // pred_check
      _
    $region47: #{tpu_custom_call.1} parent=1 // pred_check_branch
      %45 = sbr.rel (0) target = $region49
    $region48: #{tpu_custom_call.1} parent=1 // pred_region
      _
    $region49: #{tpu_custom_call.1} parent=1 // pred_fallthru
      _
    // Predicated region
    $region50: #{tpu_custom_call.1} parent=1 // pred_check
      _
    $region51: #{tpu_custom_call.1} parent=1 // pred_check_branch
      %47 = sbr.rel (0) target = $region53
    $region52: #{tpu_custom_call.1} parent=1 // pred_region
      _
    $region53: #{tpu_custom_call.1} parent=1 // pred_fallthru
      _
    // Predicated region
    $region54: #{tpu_custom_call.1} parent=1 // pred_check
      _
    $region55: #{tpu_custom_call.1} parent=1 // pred_check_branch
      %49 = sbr.rel (0) target = $region57
    $region56: #{tpu_custom_call.1} parent=1 // pred_region
      _
    $region57: #{tpu_custom_call.1} parent=1 // pred_fallthru
      _
    %v50 = vld [vmem:[%s0] sm:$0xff]
    %v51 = vld [vmem:[%s0 + $0x8] sm:$0xff]
    %v52 = vld [vmem:[%s0 + $0x10] sm:$0xff]
    %v53 = vld [vmem:[%s0 + $0x18] sm:$0xff]
    %v54 = vld [vmem:[%s0 + $0x20] sm:$0xff]
    %v55 = vld [vmem:[%s0 + $0x28] sm:$0xff]
    %v56 = vld [vmem:[%s0 + $0x30] sm:$0xff]
    %v57 = vld [vmem:[%s0 + $0x38] sm:$0xff]
    %v58 = vld [vmem:[%s0 + $0x40] sm:$0xff]
    %v59 = vld [vmem:[%s0 + $0x48] sm:$0xff]
    %v60 = vld [vmem:[%s0 + $0x50] sm:$0xff]
    %v61 = vld [vmem:[%s0 + $0x58] sm:$0xff]
    %v62 = vld [vmem:[%s0 + $0x60] sm:$0xff]
    %v63 = vld [vmem:[%s0 + $0x68] sm:$0xff]
    %v64 = vld [vmem:[%s0 + $0x70] sm:$0xff]
    %v65 = vld [vmem:[%s0 + $0x78] sm:$0xff]
    %v66 = vtanh.pop %v50
    %v67 = vtanh.pop %v51
    %v68 = vtanh.pop %v52
    %v69 = vtanh.pop %v53
    %v70 = vtanh.pop %v54
    %v71 = vtanh.pop %v55
    %v72 = vtanh.pop %v56
    %v73 = vtanh.pop %v57
    %v74 = vtanh.pop %v58
    %v75 = vtanh.pop %v59
    %v76 = vtanh.pop %v60
    %v77 = vtanh.pop %v61
    %v78 = vtanh.pop %v62
    %v79 = vtanh.pop %v63
    %v80 = vtanh.pop %v64
    %v81 = vtanh.pop %v65
    %v82 = vld [vmem:[%s6] sm:$0xf]
    %v83 = vld [vmem:[%s7] sm:$0x1]
    %v85 = vlaneseq
    %v86 = vshrl.u32 %v85, 7
    %v87 = vsub.s32 0, %v86
    %v88 = vrot.slane %v83, %v87
    %vm90 = vcmask 31744
    %v92 = vsel %vm90, %v66, 0
    %v95 = vsel %vm90, %v67, 0
    %v98 = vsel %vm90, %v68, 0
    %v101 = vsel %vm90, %v69, 0
    %v104 = vsel %vm90, %v70, 0
    %v107 = vsel %vm90, %v71, 0
    %v110 = vsel %vm90, %v72, 0
    %v113 = vsel %vm90, %v73, 0
    %v116 = vsel %vm90, %v74, 0
    %v119 = vsel %vm90, %v75, 0
    %v122 = vsel %vm90, %v76, 0
    %v125 = vsel %vm90, %v77, 0
    %v128 = vsel %vm90, %v78, 0
    %v131 = vsel %vm90, %v79, 0
    %v134 = vsel %vm90, %v80, 0
    %v137 = vsel %vm90, %v81, 0
    %vm139 = vcmask 1043456
    %v141 = vsel %vm139, %v82, 0
    %143 = vmatprep.subr.mxu0 0.0
    %144 = vmatpush1.msra.mxu0 0.0
    %145 = vmatprep.subr.mxu0 0.0
    %146 = vmatpush1.msra.mxu0 0.0
    %147 = vmatprep.subr.mxu0 0.0
    %148 = vmatpush1.msra.mxu0 0.0
    %149 = vmatprep.subr.mxu0 0.0
    %150 = vmatpush1.msra.mxu0 0.0
    %151 = vmatprep.subr.mxu0 0.0
    %152 = vmatpush1.msra.mxu0 0.0
    %153 = vmatprep.subr.mxu0 0.0
    %154 = vmatpush1.msra.mxu0 0.0
    %155 = vmatprep.subr.mxu0 0.0
    %156 = vmatpush1.msra.mxu0 0.0
    %157 = vmatprep.subr.mxu0 0.0
    %158 = vmatpush1.msra.mxu0 0.0
    %159 = vmatprep.subr.mxu0 0.0
    %160 = vmatpush1.msra.mxu0 0.0
    %161 = vmatprep.subr.mxu0 0.0
    %162 = vmatpush1.msra.mxu0 0.0
    %163 = vmatprep.subr.mxu0 0.0
    %164 = vmatpush1.msra.mxu0 0.0
    %165 = vmatprep.subr.mxu0 0.0
    %166 = vmatpush1.msra.mxu0 0.0
    %167 = vmatprep.subr.mxu0 0.0
    %168 = vmatpush1.msra.mxu0 0.0
    %169 = vmatprep.subr.mxu0 0.0
    %170 = vmatpush1.msra.mxu0 0.0
    %171 = vmatprep.subr.mxu0 0.0
    %172 = vmatpush1.msra.mxu0 0.0
    %173 = vmatprep.subr.mxu0 0.0
    %174 = vmatpush1.msra.mxu0 %v141
    %175 = vmatprep.subr.mxu0 0.0
    %176 = vmatpush2.msra.mxu0 0.0
    %177 = vmatprep.subr.mxu0 0.0
    %178 = vmatpush2.msra.mxu0 0.0
    %179 = vmatprep.subr.mxu0 0.0
    %180 = vmatpush2.msra.mxu0 0.0
    %181 = vmatprep.subr.mxu0 0.0
    %182 = vmatpush2.msra.mxu0 0.0
    %183 = vmatprep.subr.mxu0 0.0
    %184 = vmatpush2.msra.mxu0 0.0
    %185 = vmatprep.subr.mxu0 0.0
    %186 = vmatpush2.msra.mxu0 0.0
    %187 = vmatprep.subr.mxu0 0.0
    %188 = vmatpush2.msra.mxu0 0.0
    %189 = vmatprep.subr.mxu0 0.0
    %190 = vmatpush2.msra.mxu0 0.0
    %191 = vmatprep.subr.mxu0 0.0
    %192 = vmatpush2.msra.mxu0 0.0
    %193 = vmatprep.subr.mxu0 0.0
    %194 = vmatpush2.msra.mxu0 0.0
    %195 = vmatprep.subr.mxu0 0.0
    %196 = vmatpush2.msra.mxu0 0.0
    %197 = vmatprep.subr.mxu0 0.0
    %198 = vmatpush2.msra.mxu0 0.0
    %199 = vmatprep.subr.mxu0 0.0
    %200 = vmatpush2.msra.mxu0 0.0
    %201 = vmatprep.subr.mxu0 0.0
    %202 = vmatpush2.msra.mxu0 0.0
    %203 = vmatprep.subr.mxu0 0.0
    %204 = vmatpush2.msra.mxu0 0.0
    %205 = vmatprep.subr.mxu0 0.0
    %206 = vmatpush2.msra.mxu0 0.0
    %207 = vmatprep.mubr.f32.mxu0 0.0
    %208 = vmatmul.mubr.f32.gmra.mxu0 %v92
    %v209 = vpop.f32.mrf.mxu0
    %v210 = vadd.f32 %v88, %v209
    %v211 = vpop.f32.mrf.mxu0
    %212 = vmatprep.mubr.f32.mxu0 0.0
    %213 = vmatmul.mubr.f32.gmra.mxu0 %v95
    %v214 = vpop.f32.mrf.mxu0
    %v215 = vadd.f32 %v88, %v214
    %v216 = vpop.f32.mrf.mxu0
    %217 = vmatprep.mubr.f32.mxu0 0.0
    %218 = vmatmul.mubr.f32.gmra.mxu0 %v98
    %v219 = vpop.f32.mrf.mxu0
    %v220 = vadd.f32 %v88, %v219
    %v221 = vpop.f32.mrf.mxu0
    %222 = vmatprep.mubr.f32.mxu0 0.0
    %223 = vmatmul.mubr.f32.gmra.mxu0 %v101
    %v224 = vpop.f32.mrf.mxu0
    %v225 = vadd.f32 %v88, %v224
    %v226 = vpop.f32.mrf.mxu0
    %227 = vmatprep.mubr.f32.mxu0 0.0
    %228 = vmatmul.mubr.f32.gmra.mxu0 %v104
    %v229 = vpop.f32.mrf.mxu0
    %v230 = vadd.f32 %v88, %v229
    %v231 = vpop.f32.mrf.mxu0
    %232 = vmatprep.mubr.f32.mxu0 0.0
    %233 = vmatmul.mubr.f32.gmra.mxu0 %v107
    %v234 = vpop.f32.mrf.mxu0
    %v235 = vadd.f32 %v88, %v234
    %v236 = vpop.f32.mrf.mxu0
    %237 = vmatprep.mubr.f32.mxu0 0.0
    %238 = vmatmul.mubr.f32.gmra.mxu0 %v110
    %v239 = vpop.f32.mrf.mxu0
    %v240 = vadd.f32 %v88, %v239
    %v241 = vpop.f32.mrf.mxu0
    %242 = vmatprep.mubr.f32.mxu0 0.0
    %243 = vmatmul.mubr.f32.gmra.mxu0 %v113
    %v244 = vpop.f32.mrf.mxu0
    %v245 = vadd.f32 %v88, %v244
    %v246 = vpop.f32.mrf.mxu0
    %247 = vmatprep.mubr.f32.mxu0 0.0
    %248 = vmatmul.mubr.f32.gmra.mxu0 %v116
    %v249 = vpop.f32.mrf.mxu0
    %v250 = vadd.f32 %v88, %v249
    %v251 = vpop.f32.mrf.mxu0
    %252 = vmatprep.mubr.f32.mxu0 0.0
    %253 = vmatmul.mubr.f32.gmra.mxu0 %v119
    %v254 = vpop.f32.mrf.mxu0
    %v255 = vadd.f32 %v88, %v254
    %v256 = vpop.f32.mrf.mxu0
    %257 = vmatprep.mubr.f32.mxu0 0.0
    %258 = vmatmul.mubr.f32.gmra.mxu0 %v122
    %v259 = vpop.f32.mrf.mxu0
    %v260 = vadd.f32 %v88, %v259
    %v261 = vpop.f32.mrf.mxu0
    %262 = vmatprep.mubr.f32.mxu0 0.0
    %263 = vmatmul.mubr.f32.gmra.mxu0 %v125
    %v264 = vpop.f32.mrf.mxu0
    %v265 = vadd.f32 %v88, %v264
    %v266 = vpop.f32.mrf.mxu0
    %267 = vmatprep.mubr.f32.mxu0 0.0
    %268 = vmatmul.mubr.f32.gmra.mxu0 %v128
    %v269 = vpop.f32.mrf.mxu0
    %v270 = vadd.f32 %v88, %v269
    %v271 = vpop.f32.mrf.mxu0
    %272 = vmatprep.mubr.f32.mxu0 0.0
    %273 = vmatmul.mubr.f32.gmra.mxu0 %v131
    %v274 = vpop.f32.mrf.mxu0
    %v275 = vadd.f32 %v88, %v274
    %v276 = vpop.f32.mrf.mxu0
    %277 = vmatprep.mubr.f32.mxu0 0.0
    %278 = vmatmul.mubr.f32.gmra.mxu0 %v134
    %v279 = vpop.f32.mrf.mxu0
    %v280 = vadd.f32 %v88, %v279
    %v281 = vpop.f32.mrf.mxu0
    %282 = vmatprep.mubr.f32.mxu0 0.0
    %283 = vmatmul.mubr.f32.gmra.mxu0 %v137
    %v284 = vpop.f32.mrf.mxu0
    %v285 = vadd.f32 %v88, %v284
    %v286 = vpop.f32.mrf.mxu0
    %287 = vdwg.mxu0
    %v288 = vld [vmem:[%s8] sm:$0xff]
    %v289 = vld [vmem:[%s8 + $0x8] sm:$0xff]
    %v290 = vld [vmem:[#allocation2] sm:$0x1]
    %v292 = vlaneseq
    %v293 = vshrl.u32 %v292, 7
    %v294 = vsub.s32 0, %v293
    %v295 = vrot.slane %v290, %v294
    %vm297 = vcmask 130048
    %v299 = vsel %vm297, %v210, 0
    %v302 = vsel %vm297, %v215, 0
    %v305 = vsel %vm297, %v220, 0
    %v308 = vsel %vm297, %v225, 0
    %v311 = vsel %vm297, %v230, 0
    %v314 = vsel %vm297, %v235, 0
    %v317 = vsel %vm297, %v240, 0
    %v320 = vsel %vm297, %v245, 0
    %v323 = vsel %vm297, %v250, 0
    %v326 = vsel %vm297, %v255, 0
    %v329 = vsel %vm297, %v260, 0
    %v332 = vsel %vm297, %v265, 0
    %v335 = vsel %vm297, %v270, 0
    %v338 = vsel %vm297, %v275, 0
    %v341 = vsel %vm297, %v280, 0
    %v344 = vsel %vm297, %v285, 0
    %346 = vmatprep.subr.mxu0 0.0
    %347 = vmatpush1.msra.mxu0 0.0
    %348 = vmatprep.subr.mxu0 0.0
    %349 = vmatpush1.msra.mxu0 0.0
    %350 = vmatprep.subr.mxu0 0.0
    %351 = vmatpush1.msra.mxu0 0.0
    %352 = vmatprep.subr.mxu0 0.0
    %353 = vmatpush1.msra.mxu0 0.0
    %354 = vmatprep.subr.mxu0 0.0
    %355 = vmatpush1.msra.mxu0 0.0
    %356 = vmatprep.subr.mxu0 0.0
    %357 = vmatpush1.msra.mxu0 0.0
    %358 = vmatprep.subr.mxu0 0.0
    %359 = vmatpush1.msra.mxu0 0.0
    %360 = vmatprep.subr.mxu0 0.0
    %361 = vmatpush1.msra.mxu0 0.0
    %362 = vmatprep.subr.mxu0 0.0
    %363 = vmatpush1.msra.mxu0 0.0
    %364 = vmatprep.subr.mxu0 0.0
    %365 = vmatpush1.msra.mxu0 0.0
    %366 = vmatprep.subr.mxu0 0.0
    %367 = vmatpush1.msra.mxu0 0.0
    %368 = vmatprep.subr.mxu0 0.0
    %369 = vmatpush1.msra.mxu0 0.0
    %370 = vmatprep.subr.mxu0 0.0
    %371 = vmatpush1.msra.mxu0 0.0
    %372 = vmatprep.subr.mxu0 0.0
    %373 = vmatpush1.msra.mxu0 0.0
    %374 = vmatprep.subr.mxu0 0.0
    %375 = vmatpush1.msra.mxu0 %v289
    %376 = vmatprep.subr.mxu0 0.0
    %377 = vmatpush1.msra.mxu0 %v288
    %378 = vmatprep.subr.mxu0 0.0
    %379 = vmatpush2.msra.mxu0 0.0
    %380 = vmatprep.subr.mxu0 0.0
    %381 = vmatpush2.msra.mxu0 0.0
    %382 = vmatprep.subr.mxu0 0.0
    %383 = vmatpush2.msra.mxu0 0.0
    %384 = vmatprep.subr.mxu0 0.0
    %385 = vmatpush2.msra.mxu0 0.0
    %386 = vmatprep.subr.mxu0 0.0
    %387 = vmatpush2.msra.mxu0 0.0
    %388 = vmatprep.subr.mxu0 0.0
    %389 = vmatpush2.msra.mxu0 0.0
    %390 = vmatprep.subr.mxu0 0.0
    %391 = vmatpush2.msra.mxu0 0.0
    %392 = vmatprep.subr.mxu0 0.0
    %393 = vmatpush2.msra.mxu0 0.0
    %394 = vmatprep.subr.mxu0 0.0
    %395 = vmatpush2.msra.mxu0 0.0
    %396 = vmatprep.subr.mxu0 0.0
    %397 = vmatpush2.msra.mxu0 0.0
    %398 = vmatprep.subr.mxu0 0.0
    %399 = vmatpush2.msra.mxu0 0.0
    %400 = vmatprep.subr.mxu0 0.0
    %401 = vmatpush2.msra.mxu0 0.0
    %402 = vmatprep.subr.mxu0 0.0
    %403 = vmatpush2.msra.mxu0 0.0
    %404 = vmatprep.subr.mxu0 0.0
    %405 = vmatpush2.msra.mxu0 0.0
    %406 = vmatprep.subr.mxu0 0.0
    %407 = vmatpush2.msra.mxu0 0.0
    %408 = vmatprep.subr.mxu0 0.0
    %409 = vmatpush2.msra.mxu0 0.0
    %410 = vmatprep.mubr.f32.mxu0 0.0
    %411 = vmatmul.mubr.f32.gmra.mxu0 %v299
    %v412 = vpop.f32.mrf.mxu0
    %v413 = vadd.f32 %v295, %v412
    %v414 = vpop.f32.mrf.mxu0
    %415 = vmatprep.mubr.f32.mxu0 0.0
    %416 = vmatmul.mubr.f32.gmra.mxu0 %v302
    %v417 = vpop.f32.mrf.mxu0
    %v418 = vadd.f32 %v295, %v417
    %v419 = vpop.f32.mrf.mxu0
    %420 = vmatprep.mubr.f32.mxu0 0.0
    %421 = vmatmul.mubr.f32.gmra.mxu0 %v305
    %v422 = vpop.f32.mrf.mxu0
    %v423 = vadd.f32 %v295, %v422
    %v424 = vpop.f32.mrf.mxu0
    %425 = vmatprep.mubr.f32.mxu0 0.0
    %426 = vmatmul.mubr.f32.gmra.mxu0 %v308
    %v427 = vpop.f32.mrf.mxu0
    %v428 = vadd.f32 %v295, %v427
    %v429 = vpop.f32.mrf.mxu0
    %430 = vmatprep.mubr.f32.mxu0 0.0
    %431 = vmatmul.mubr.f32.gmra.mxu0 %v311
    %v432 = vpop.f32.mrf.mxu0
    %v433 = vadd.f32 %v295, %v432
    %v434 = vpop.f32.mrf.mxu0
    %435 = vmatprep.mubr.f32.mxu0 0.0
    %436 = vmatmul.mubr.f32.gmra.mxu0 %v314
    %v437 = vpop.f32.mrf.mxu0
    %v438 = vadd.f32 %v295, %v437
    %v439 = vpop.f32.mrf.mxu0
    %440 = vmatprep.mubr.f32.mxu0 0.0
    %441 = vmatmul.mubr.f32.gmra.mxu0 %v317
    %v442 = vpop.f32.mrf.mxu0
    %v443 = vadd.f32 %v295, %v442
    %v444 = vpop.f32.mrf.mxu0
    %445 = vmatprep.mubr.f32.mxu0 0.0
    %446 = vmatmul.mubr.f32.gmra.mxu0 %v320
    %v447 = vpop.f32.mrf.mxu0
    %v448 = vadd.f32 %v295, %v447
    %v449 = vpop.f32.mrf.mxu0
    %450 = vmatprep.mubr.f32.mxu0 0.0
    %451 = vmatmul.mubr.f32.gmra.mxu0 %v323
    %v452 = vpop.f32.mrf.mxu0
    %v453 = vadd.f32 %v295, %v452
    %v454 = vpop.f32.mrf.mxu0
    %455 = vmatprep.mubr.f32.mxu0 0.0
    %456 = vmatmul.mubr.f32.gmra.mxu0 %v326
    %v457 = vpop.f32.mrf.mxu0
    %v458 = vadd.f32 %v295, %v457
    %v459 = vpop.f32.mrf.mxu0
    %460 = vmatprep.mubr.f32.mxu0 0.0
    %461 = vmatmul.mubr.f32.gmra.mxu0 %v329
    %v462 = vpop.f32.mrf.mxu0
    %v463 = vadd.f32 %v295, %v462
    %v464 = vpop.f32.mrf.mxu0
    %465 = vmatprep.mubr.f32.mxu0 0.0
    %466 = vmatmul.mubr.f32.gmra.mxu0 %v332
    %v467 = vpop.f32.mrf.mxu0
    %v468 = vadd.f32 %v295, %v467
    %v469 = vpop.f32.mrf.mxu0
    %470 = vmatprep.mubr.f32.mxu0 0.0
    %471 = vmatmul.mubr.f32.gmra.mxu0 %v335
    %v472 = vpop.f32.mrf.mxu0
    %v473 = vadd.f32 %v295, %v472
    %v474 = vpop.f32.mrf.mxu0
    %475 = vmatprep.mubr.f32.mxu0 0.0
    %476 = vmatmul.mubr.f32.gmra.mxu0 %v338
    %v477 = vpop.f32.mrf.mxu0
    %v478 = vadd.f32 %v295, %v477
    %v479 = vpop.f32.mrf.mxu0
    %480 = vmatprep.mubr.f32.mxu0 0.0
    %481 = vmatmul.mubr.f32.gmra.mxu0 %v341
    %v482 = vpop.f32.mrf.mxu0
    %v483 = vadd.f32 %v295, %v482
    %v484 = vpop.f32.mrf.mxu0
    %485 = vmatprep.mubr.f32.mxu0 0.0
    %486 = vmatmul.mubr.f32.gmra.mxu0 %v344
    %v487 = vpop.f32.mrf.mxu0
    %v488 = vadd.f32 %v295, %v487
    %v489 = vpop.f32.mrf.mxu0
    %490 = vdwg.mxu0
    %v491 = vmax.f32 %v413, 0.0
    %v492 = vmax.f32 %v418, 0.0
    %v493 = vmax.f32 %v423, 0.0
    %v494 = vmax.f32 %v428, 0.0
    %v495 = vmax.f32 %v433, 0.0
    %v496 = vmax.f32 %v438, 0.0
    %v497 = vmax.f32 %v443, 0.0
    %v498 = vmax.f32 %v448, 0.0
    %v499 = vmax.f32 %v453, 0.0
    %v500 = vmax.f32 %v458, 0.0
    %v501 = vmax.f32 %v463, 0.0
    %v502 = vmax.f32 %v468, 0.0
    %v503 = vmax.f32 %v473, 0.0
    %v504 = vmax.f32 %v478, 0.0
    %v505 = vmax.f32 %v483, 0.0
    %v506 = vmax.f32 %v488, 0.0
    %v507 = vld [vmem:[%s1] sm:$0xff]
    %v508 = vld [vmem:[%s1 + $0x8] sm:$0xff]
    %v509 = vld [vmem:[%s10] sm:$0xf]
    %v510 = vld [vmem:[%s11] sm:$0x1]
    %v512 = vlaneseq
    %v513 = vshrl.u32 %v512, 7
    %v514 = vsub.s32 0, %v513
    %v515 = vrot.slane %v510, %v514
    %v518 = vsel %vm90, %v507, 0
    %v521 = vsel %vm90, %v508, 0
    %v524 = vsel %vm139, %v509, 0
    %526 = vmatprep.subr.mxu0 0.0
    %527 = vmatpush1.msra.mxu0 0.0
    %528 = vmatprep.subr.mxu0 0.0
    %529 = vmatpush1.msra.mxu0 0.0
    %530 = vmatprep.subr.mxu0 0.0
    %531 = vmatpush1.msra.mxu0 0.0
    %532 = vmatprep.subr.mxu0 0.0
    %533 = vmatpush1.msra.mxu0 0.0
    %534 = vmatprep.subr.mxu0 0.0
    %535 = vmatpush1.msra.mxu0 0.0
    %536 = vmatprep.subr.mxu0 0.0
    %537 = vmatpush1.msra.mxu0 0.0
    %538 = vmatprep.subr.mxu0 0.0
    %539 = vmatpush1.msra.mxu0 0.0
    %540 = vmatprep.subr.mxu0 0.0
    %541 = vmatpush1.msra.mxu0 0.0
    %542 = vmatprep.subr.mxu0 0.0
    %543 = vmatpush1.msra.mxu0 0.0
    %544 = vmatprep.subr.mxu0 0.0
    %545 = vmatpush1.msra.mxu0 0.0
    %546 = vmatprep.subr.mxu0 0.0
    %547 = vmatpush1.msra.mxu0 0.0
    %548 = vmatprep.subr.mxu0 0.0
    %549 = vmatpush1.msra.mxu0 0.0
    %550 = vmatprep.subr.mxu0 0.0
    %551 = vmatpush1.msra.mxu0 0.0
    %552 = vmatprep.subr.mxu0 0.0
    %553 = vmatpush1.msra.mxu0 0.0
    %554 = vmatprep.subr.mxu0 0.0
    %555 = vmatpush1.msra.mxu0 0.0
    %556 = vmatprep.subr.mxu0 0.0
    %557 = vmatpush1.msra.mxu0 %v524
    %558 = vmatprep.subr.mxu0 0.0
    %559 = vmatpush2.msra.mxu0 0.0
    %560 = vmatprep.subr.mxu0 0.0
    %561 = vmatpush2.msra.mxu0 0.0
    %562 = vmatprep.subr.mxu0 0.0
    %563 = vmatpush2.msra.mxu0 0.0
    %564 = vmatprep.subr.mxu0 0.0
    %565 = vmatpush2.msra.mxu0 0.0
    %566 = vmatprep.subr.mxu0 0.0
    %567 = vmatpush2.msra.mxu0 0.0
    %568 = vmatprep.subr.mxu0 0.0
    %569 = vmatpush2.msra.mxu0 0.0
    %570 = vmatprep.subr.mxu0 0.0
    %571 = vmatpush2.msra.mxu0 0.0
    %572 = vmatprep.subr.mxu0 0.0
    %573 = vmatpush2.msra.mxu0 0.0
    %574 = vmatprep.subr.mxu0 0.0
    %575 = vmatpush2.msra.mxu0 0.0
    %576 = vmatprep.subr.mxu0 0.0
    %577 = vmatpush2.msra.mxu0 0.0
    %578 = vmatprep.subr.mxu0 0.0
    %579 = vmatpush2.msra.mxu0 0.0
    %580 = vmatprep.subr.mxu0 0.0
    %581 = vmatpush2.msra.mxu0 0.0
    %582 = vmatprep.subr.mxu0 0.0
    %583 = vmatpush2.msra.mxu0 0.0
    %584 = vmatprep.subr.mxu0 0.0
    %585 = vmatpush2.msra.mxu0 0.0
    %586 = vmatprep.subr.mxu0 0.0
    %587 = vmatpush2.msra.mxu0 0.0
    %588 = vmatprep.subr.mxu0 0.0
    %589 = vmatpush2.msra.mxu0 0.0
    %590 = vmatprep.mubr.f32.mxu0 0.0
    %591 = vmatmul.mubr.f32.gmra.mxu0 %v518
    %v592 = vpop.f32.mrf.mxu0
    %v593 = vadd.f32 %v515, %v592
    %v594 = vpop.f32.mrf.mxu0
    %595 = vmatprep.mubr.f32.mxu0 0.0
    %596 = vmatmul.mubr.f32.gmra.mxu0 %v521
    %v597 = vpop.f32.mrf.mxu0
    %v598 = vadd.f32 %v515, %v597
    %v599 = vpop.f32.mrf.mxu0
    %600 = vdwg.mxu0
    %v601 = vld [vmem:[%s12] sm:$0xf]
    %v602 = vld [vmem:[%s13] sm:$0x1]
    %v604 = vlaneseq
    %v605 = vshrl.u32 %v604, 7
    %v606 = vsub.s32 0, %v605
    %v607 = vrot.slane %v602, %v606
    %v610 = vsel %vm90, %v50, 0
    %v613 = vsel %vm90, %v51, 0
    %v616 = vsel %vm90, %v52, 0
    %v619 = vsel %vm90, %v53, 0
    %v622 = vsel %vm90, %v54, 0
    %v625 = vsel %vm90, %v55, 0
    %v628 = vsel %vm90, %v56, 0
    %v631 = vsel %vm90, %v57, 0
    %v634 = vsel %vm90, %v58, 0
    %v637 = vsel %vm90, %v59, 0
    %v640 = vsel %vm90, %v60, 0
    %v643 = vsel %vm90, %v61, 0
    %v646 = vsel %vm90, %v62, 0
    %v649 = vsel %vm90, %v63, 0
    %v652 = vsel %vm90, %v64, 0
    %v655 = vsel %vm90, %v65, 0
    %v658 = vsel %vm139, %v601, 0
    %660 = vmatprep.subr.mxu0 0.0
    %661 = vmatpush1.msra.mxu0 0.0
    %662 = vmatprep.subr.mxu0 0.0
    %663 = vmatpush1.msra.mxu0 0.0
    %664 = vmatprep.subr.mxu0 0.0
    %665 = vmatpush1.msra.mxu0 0.0
    %666 = vmatprep.subr.mxu0 0.0
    %667 = vmatpush1.msra.mxu0 0.0
    %668 = vmatprep.subr.mxu0 0.0
    %669 = vmatpush1.msra.mxu0 0.0
    %670 = vmatprep.subr.mxu0 0.0
    %671 = vmatpush1.msra.mxu0 0.0
    %672 = vmatprep.subr.mxu0 0.0
    %673 = vmatpush1.msra.mxu0 0.0
    %674 = vmatprep.subr.mxu0 0.0
    %675 = vmatpush1.msra.mxu0 0.0
    %676 = vmatprep.subr.mxu0 0.0
    %677 = vmatpush1.msra.mxu0 0.0
    %678 = vmatprep.subr.mxu0 0.0
    %679 = vmatpush1.msra.mxu0 0.0
    %680 = vmatprep.subr.mxu0 0.0
    %681 = vmatpush1.msra.mxu0 0.0
    %682 = vmatprep.subr.mxu0 0.0
    %683 = vmatpush1.msra.mxu0 0.0
    %684 = vmatprep.subr.mxu0 0.0
    %685 = vmatpush1.msra.mxu0 0.0
    %686 = vmatprep.subr.mxu0 0.0
    %687 = vmatpush1.msra.mxu0 0.0
    %688 = vmatprep.subr.mxu0 0.0
    %689 = vmatpush1.msra.mxu0 0.0
    %690 = vmatprep.subr.mxu0 0.0
    %691 = vmatpush1.msra.mxu0 %v658
    %692 = vmatprep.subr.mxu0 0.0
    %693 = vmatpush2.msra.mxu0 0.0
    %694 = vmatprep.subr.mxu0 0.0
    %695 = vmatpush2.msra.mxu0 0.0
    %696 = vmatprep.subr.mxu0 0.0
    %697 = vmatpush2.msra.mxu0 0.0
    %698 = vmatprep.subr.mxu0 0.0
    %699 = vmatpush2.msra.mxu0 0.0
    %700 = vmatprep.subr.mxu0 0.0
    %701 = vmatpush2.msra.mxu0 0.0
    %702 = vmatprep.subr.mxu0 0.0
    %703 = vmatpush2.msra.mxu0 0.0
    %704 = vmatprep.subr.mxu0 0.0
    %705 = vmatpush2.msra.mxu0 0.0
    %706 = vmatprep.subr.mxu0 0.0
    %707 = vmatpush2.msra.mxu0 0.0
    %708 = vmatprep.subr.mxu0 0.0
    %709 = vmatpush2.msra.mxu0 0.0
    %710 = vmatprep.subr.mxu0 0.0
    %711 = vmatpush2.msra.mxu0 0.0
    %712 = vmatprep.subr.mxu0 0.0
    %713 = vmatpush2.msra.mxu0 0.0
    %714 = vmatprep.subr.mxu0 0.0
    %715 = vmatpush2.msra.mxu0 0.0
    %716 = vmatprep.subr.mxu0 0.0
    %717 = vmatpush2.msra.mxu0 0.0
    %718 = vmatprep.subr.mxu0 0.0
    %719 = vmatpush2.msra.mxu0 0.0
    %720 = vmatprep.subr.mxu0 0.0
    %721 = vmatpush2.msra.mxu0 0.0
    %722 = vmatprep.subr.mxu0 0.0
    %723 = vmatpush2.msra.mxu0 0.0
    %724 = vmatprep.mubr.f32.mxu0 0.0
    %725 = vmatmul.mubr.f32.gmra.mxu0 %v610
    %v726 = vpop.f32.mrf.mxu0
    %v727 = vadd.f32 %v607, %v726
    %v728 = vpop.f32.mrf.mxu0
    %729 = vmatprep.mubr.f32.mxu0 0.0
    %730 = vmatmul.mubr.f32.gmra.mxu0 %v613
    %v731 = vpop.f32.mrf.mxu0
    %v732 = vadd.f32 %v607, %v731
    %v733 = vpop.f32.mrf.mxu0
    %734 = vmatprep.mubr.f32.mxu0 0.0
    %735 = vmatmul.mubr.f32.gmra.mxu0 %v616
    %v736 = vpop.f32.mrf.mxu0
    %v737 = vadd.f32 %v607, %v736
    %v738 = vpop.f32.mrf.mxu0
    %739 = vmatprep.mubr.f32.mxu0 0.0
    %740 = vmatmul.mubr.f32.gmra.mxu0 %v619
    %v741 = vpop.f32.mrf.mxu0
    %v742 = vadd.f32 %v607, %v741
    %v743 = vpop.f32.mrf.mxu0
    %744 = vmatprep.mubr.f32.mxu0 0.0
    %745 = vmatmul.mubr.f32.gmra.mxu0 %v622
    %v746 = vpop.f32.mrf.mxu0
    %v747 = vadd.f32 %v607, %v746
    %v748 = vpop.f32.mrf.mxu0
    %749 = vmatprep.mubr.f32.mxu0 0.0
    %750 = vmatmul.mubr.f32.gmra.mxu0 %v625
    %v751 = vpop.f32.mrf.mxu0
    %v752 = vadd.f32 %v607, %v751
    %v753 = vpop.f32.mrf.mxu0
    %754 = vmatprep.mubr.f32.mxu0 0.0
    %755 = vmatmul.mubr.f32.gmra.mxu0 %v628
    %v756 = vpop.f32.mrf.mxu0
    %v757 = vadd.f32 %v607, %v756
    %v758 = vpop.f32.mrf.mxu0
    %759 = vmatprep.mubr.f32.mxu0 0.0
    %760 = vmatmul.mubr.f32.gmra.mxu0 %v631
    %v761 = vpop.f32.mrf.mxu0
    %v762 = vadd.f32 %v607, %v761
    %v763 = vpop.f32.mrf.mxu0
    %764 = vmatprep.mubr.f32.mxu0 0.0
    %765 = vmatmul.mubr.f32.gmra.mxu0 %v634
    %v766 = vpop.f32.mrf.mxu0
    %v767 = vadd.f32 %v607, %v766
    %v768 = vpop.f32.mrf.mxu0
    %769 = vmatprep.mubr.f32.mxu0 0.0
    %770 = vmatmul.mubr.f32.gmra.mxu0 %v637
    %v771 = vpop.f32.mrf.mxu0
    %v772 = vadd.f32 %v607, %v771
    %v773 = vpop.f32.mrf.mxu0
    %774 = vmatprep.mubr.f32.mxu0 0.0
    %775 = vmatmul.mubr.f32.gmra.mxu0 %v640
    %v776 = vpop.f32.mrf.mxu0
    %v777 = vadd.f32 %v607, %v776
    %v778 = vpop.f32.mrf.mxu0
    %779 = vmatprep.mubr.f32.mxu0 0.0
    %780 = vmatmul.mubr.f32.gmra.mxu0 %v643
    %v781 = vpop.f32.mrf.mxu0
    %v782 = vadd.f32 %v607, %v781
    %v783 = vpop.f32.mrf.mxu0
    %784 = vmatprep.mubr.f32.mxu0 0.0
    %785 = vmatmul.mubr.f32.gmra.mxu0 %v646
    %v786 = vpop.f32.mrf.mxu0
    %v787 = vadd.f32 %v607, %v786
    %v788 = vpop.f32.mrf.mxu0
    %789 = vmatprep.mubr.f32.mxu0 0.0
    %790 = vmatmul.mubr.f32.gmra.mxu0 %v649
    %v791 = vpop.f32.mrf.mxu0
    %v792 = vadd.f32 %v607, %v791
    %v793 = vpop.f32.mrf.mxu0
    %794 = vmatprep.mubr.f32.mxu0 0.0
    %795 = vmatmul.mubr.f32.gmra.mxu0 %v652
    %v796 = vpop.f32.mrf.mxu0
    %v797 = vadd.f32 %v607, %v796
    %v798 = vpop.f32.mrf.mxu0
    %799 = vmatprep.mubr.f32.mxu0 0.0
    %800 = vmatmul.mubr.f32.gmra.mxu0 %v655
    %v801 = vpop.f32.mrf.mxu0
    %v802 = vadd.f32 %v607, %v801
    %v803 = vpop.f32.mrf.mxu0
    %804 = vdwg.mxu0
    %vm805 = vcmask 64512
    %v807 = vsel %vm805, %v593, 0
    %v810 = vsel %vm805, %v598, 0
    %v813 = vsel %vm805, %v727, 0
    %v816 = vsel %vm805, %v732, 0
    %v819 = vsel %vm805, %v737, 0
    %v822 = vsel %vm805, %v742, 0
    %v825 = vsel %vm805, %v747, 0
    %v828 = vsel %vm805, %v752, 0
    %v831 = vsel %vm805, %v757, 0
    %v834 = vsel %vm805, %v762, 0
    %v837 = vsel %vm805, %v767, 0
    %v840 = vsel %vm805, %v772, 0
    %v843 = vsel %vm805, %v777, 0
    %v846 = vsel %vm805, %v782, 0
    %v849 = vsel %vm805, %v787, 0
    %v852 = vsel %vm805, %v792, 0
    %v855 = vsel %vm805, %v797, 0
    %v858 = vsel %vm805, %v802, 0
    %860 = vmatprep.subr.mxu0 0.0
    %861 = vmatpush1.xpose.msra.mxu0 %v858
    %862 = vmatprep.subr.mxu0 0.0
    %863 = vmatpush1.xpose.msra.mxu0 %v855
    %864 = vmatprep.subr.mxu0 0.0
    %865 = vmatpush1.xpose.msra.mxu0 %v852
    %866 = vmatprep.subr.mxu0 0.0
    %867 = vmatpush1.xpose.msra.mxu0 %v849
    %868 = vmatprep.subr.mxu0 0.0
    %869 = vmatpush1.xpose.msra.mxu0 %v846
    %870 = vmatprep.subr.mxu0 0.0
    %871 = vmatpush1.xpose.msra.mxu0 %v843
    %872 = vmatprep.subr.mxu0 0.0
    %873 = vmatpush1.xpose.msra.mxu0 %v840
    %874 = vmatprep.subr.mxu0 0.0
    %875 = vmatpush1.xpose.msra.mxu0 %v837
    %876 = vmatprep.subr.mxu0 0.0
    %877 = vmatpush1.xpose.msra.mxu0 %v834
    %878 = vmatprep.subr.mxu0 0.0
    %879 = vmatpush1.xpose.msra.mxu0 %v831
    %880 = vmatprep.subr.mxu0 0.0
    %881 = vmatpush1.xpose.msra.mxu0 %v828
    %882 = vmatprep.subr.mxu0 0.0
    %883 = vmatpush1.xpose.msra.mxu0 %v825
    %884 = vmatprep.subr.mxu0 0.0
    %885 = vmatpush1.xpose.msra.mxu0 %v822
    %886 = vmatprep.subr.mxu0 0.0
    %887 = vmatpush1.xpose.msra.mxu0 %v819
    %888 = vmatprep.subr.mxu0 0.0
    %889 = vmatpush1.xpose.msra.mxu0 %v816
    %890 = vmatprep.subr.mxu0 0.0
    %891 = vmatpush1.xpose.msra.mxu0 %v813
    %892 = vmatprep.subr.mxu0 0.0
    %893 = vmatpush2.xpose.msra.mxu0 0.0
    %894 = vmatprep.subr.mxu0 0.0
    %895 = vmatpush2.xpose.msra.mxu0 0.0
    %896 = vmatprep.subr.mxu0 0.0
    %897 = vmatpush2.xpose.msra.mxu0 0.0
    %898 = vmatprep.subr.mxu0 0.0
    %899 = vmatpush2.xpose.msra.mxu0 0.0
    %900 = vmatprep.subr.mxu0 0.0
    %901 = vmatpush2.xpose.msra.mxu0 0.0
    %902 = vmatprep.subr.mxu0 0.0
    %903 = vmatpush2.xpose.msra.mxu0 0.0
    %904 = vmatprep.subr.mxu0 0.0
    %905 = vmatpush2.xpose.msra.mxu0 0.0
    %906 = vmatprep.subr.mxu0 0.0
    %907 = vmatpush2.xpose.msra.mxu0 0.0
    %908 = vmatprep.subr.mxu0 0.0
    %909 = vmatpush2.xpose.msra.mxu0 0.0
    %910 = vmatprep.subr.mxu0 0.0
    %911 = vmatpush2.xpose.msra.mxu0 0.0
    %912 = vmatprep.subr.mxu0 0.0
    %913 = vmatpush2.xpose.msra.mxu0 0.0
    %914 = vmatprep.subr.mxu0 0.0
    %915 = vmatpush2.xpose.msra.mxu0 0.0
    %916 = vmatprep.subr.mxu0 0.0
    %917 = vmatpush2.xpose.msra.mxu0 0.0
    %918 = vmatprep.subr.mxu0 0.0
    %919 = vmatpush2.xpose.msra.mxu0 0.0
    %920 = vmatprep.subr.mxu0 0.0
    %921 = vmatpush2.xpose.msra.mxu0 0.0
    %922 = vmatprep.subr.mxu0 0.0
    %923 = vmatpush2.xpose.msra.mxu0 0.0
    %924 = vmatprep.mubr.f32.mxu0 0.0
    %925 = vmatmul.mubr.f32.gmra.mxu0 %v807
    %v926 = vpop.f32.mrf.mxu0
    %v927 = vadd.f32 0.0, %v926
    %v928 = vpop.f32.mrf.mxu0
    %929 = vmatprep.mubr.f32.mxu0 0.0
    %930 = vmatmul.mubr.f32.gmra.mxu0 %v810
    %v931 = vpop.f32.mrf.mxu0
    %v932 = vadd.f32 0.0, %v931
    %v933 = vpop.f32.mrf.mxu0
    %934 = vdwg.mxu0
    %v935 = vld [vmem:[%s2] sm:$0xff]
    %v936 = vld [vmem:[%s2 + $0x8] sm:$0xff]
    %v937 = vld [vmem:[%s3] sm:$0xff]
    %v938 = vld [vmem:[%s3 + $0x8] sm:$0xff]
    %v939 = vld [vmem:[%s3 + $0x10] sm:$0xff]
    %v940 = vld [vmem:[%s3 + $0x18] sm:$0xff]
    %v941 = vld [vmem:[%s3 + $0x20] sm:$0xff]
    %v942 = vld [vmem:[%s3 + $0x28] sm:$0xff]
    %v943 = vld [vmem:[%s3 + $0x30] sm:$0xff]
    %v944 = vld [vmem:[%s3 + $0x38] sm:$0xff]
    %v945 = vld [vmem:[%s3 + $0x40] sm:$0xff]
    %v946 = vld [vmem:[%s3 + $0x48] sm:$0xff]
    %v947 = vld [vmem:[%s3 + $0x50] sm:$0xff]
    %v948 = vld [vmem:[%s3 + $0x58] sm:$0xff]
    %v949 = vld [vmem:[%s3 + $0x60] sm:$0xff]
    %v950 = vld [vmem:[%s3 + $0x68] sm:$0xff]
    %v951 = vld [vmem:[%s3 + $0x70] sm:$0xff]
    %v952 = vld [vmem:[%s3 + $0x78] sm:$0xff]
    %954 = vset.pattern.permute.xlu0 0
    %955 = vperm.xlu0 %954, %v491
    %v956 = vpop.permute.xlu0 %955
    %959 = vset.pattern.permute.xlu0 0
    %960 = vperm.xlu0 %959, %v492
    %v961 = vpop.permute.xlu0 %960
    %964 = vset.pattern.permute.xlu0 0
    %965 = vperm.xlu0 %964, %v493
    %v966 = vpop.permute.xlu0 %965
    %969 = vset.pattern.permute.xlu0 0
    %970 = vperm.xlu0 %969, %v494
    %v971 = vpop.permute.xlu0 %970
    %974 = vset.pattern.permute.xlu0 0
    %975 = vperm.xlu0 %974, %v495
    %v976 = vpop.permute.xlu0 %975
    %979 = vset.pattern.permute.xlu0 0
    %980 = vperm.xlu0 %979, %v496
    %v981 = vpop.permute.xlu0 %980
    %984 = vset.pattern.permute.xlu0 0
    %985 = vperm.xlu0 %984, %v497
    %v986 = vpop.permute.xlu0 %985
    %989 = vset.pattern.permute.xlu0 0
    %990 = vperm.xlu0 %989, %v498
    %v991 = vpop.permute.xlu0 %990
    %994 = vset.pattern.permute.xlu0 0
    %995 = vperm.xlu0 %994, %v499
    %v996 = vpop.permute.xlu0 %995
    %999 = vset.pattern.permute.xlu0 0
    %1000 = vperm.xlu0 %999, %v500
    %v1001 = vpop.permute.xlu0 %1000
    %1004 = vset.pattern.permute.xlu0 0
    %1005 = vperm.xlu0 %1004, %v501
    %v1006 = vpop.permute.xlu0 %1005
    %1009 = vset.pattern.permute.xlu0 0
    %1010 = vperm.xlu0 %1009, %v502
    %v1011 = vpop.permute.xlu0 %1010
    %1014 = vset.pattern.permute.xlu0 0
    %1015 = vperm.xlu0 %1014, %v503
    %v1016 = vpop.permute.xlu0 %1015
    %1019 = vset.pattern.permute.xlu0 0
    %1020 = vperm.xlu0 %1019, %v504
    %v1021 = vpop.permute.xlu0 %1020
    %1024 = vset.pattern.permute.xlu0 0
    %1025 = vperm.xlu0 %1024, %v505
    %v1026 = vpop.permute.xlu0 %1025
    %1029 = vset.pattern.permute.xlu0 0
    %1030 = vperm.xlu0 %1029, %v506
    %v1031 = vpop.permute.xlu0 %1030
    %v1033 = vmul.f32 %v956, %v937
    %v1034 = vmul.f32 %v961, %v938
    %v1035 = vmul.f32 %v966, %v939
    %v1036 = vmul.f32 %v971, %v940
    %v1037 = vmul.f32 %v976, %v941
    %v1038 = vmul.f32 %v981, %v942
    %v1039 = vmul.f32 %v986, %v943
    %v1040 = vmul.f32 %v991, %v944
    %v1041 = vmul.f32 %v996, %v945
    %v1042 = vmul.f32 %v1001, %v946
    %v1043 = vmul.f32 %v1006, %v947
    %v1044 = vmul.f32 %v1011, %v948
    %v1045 = vmul.f32 %v1016, %v949
    %v1046 = vmul.f32 %v1021, %v950
    %v1047 = vmul.f32 %v1026, %v951
    %v1048 = vmul.f32 %v1031, %v952
    %1049 = vmatprep.subr.mxu0 0.0
    %1050 = vmatpush1.msra.mxu0 %v1048
    %1051 = vmatprep.subr.mxu0 0.0
    %1052 = vmatpush1.msra.mxu0 %v1047
    %1053 = vmatprep.subr.mxu0 0.0
    %1054 = vmatpush1.msra.mxu0 %v1046
    %1055 = vmatprep.subr.mxu0 0.0
    %1056 = vmatpush1.msra.mxu0 %v1045
    %1057 = vmatprep.subr.mxu0 0.0
    %1058 = vmatpush1.msra.mxu0 %v1044
    %1059 = vmatprep.subr.mxu0 0.0
    %1060 = vmatpush1.msra.mxu0 %v1043
    %1061 = vmatprep.subr.mxu0 0.0
    %1062 = vmatpush1.msra.mxu0 %v1042
    %1063 = vmatprep.subr.mxu0 0.0
    %1064 = vmatpush1.msra.mxu0 %v1041
    %1065 = vmatprep.subr.mxu0 0.0
    %1066 = vmatpush1.msra.mxu0 %v1040
    %1067 = vmatprep.subr.mxu0 0.0
    %1068 = vmatpush1.msra.mxu0 %v1039
    %1069 = vmatprep.subr.mxu0 0.0
    %1070 = vmatpush1.msra.mxu0 %v1038
    %1071 = vmatprep.subr.mxu0 0.0
    %1072 = vmatpush1.msra.mxu0 %v1037
    %1073 = vmatprep.subr.mxu0 0.0
    %1074 = vmatpush1.msra.mxu0 %v1036
    %1075 = vmatprep.subr.mxu0 0.0
    %1076 = vmatpush1.msra.mxu0 %v1035
    %1077 = vmatprep.subr.mxu0 0.0
    %1078 = vmatpush1.msra.mxu0 %v1034
    %1079 = vmatprep.subr.mxu0 0.0
    %1080 = vmatpush1.msra.mxu0 %v1033
    %1081 = vmatprep.subr.mxu0 0.0
    %1082 = vmatpush2.msra.mxu0 0.0
    %1083 = vmatprep.subr.mxu0 0.0
    %1084 = vmatpush2.msra.mxu0 0.0
    %1085 = vmatprep.subr.mxu0 0.0
    %1086 = vmatpush2.msra.mxu0 0.0
    %1087 = vmatprep.subr.mxu0 0.0
    %1088 = vmatpush2.msra.mxu0 0.0
    %1089 = vmatprep.subr.mxu0 0.0
    %1090 = vmatpush2.msra.mxu0 0.0
    %1091 = vmatprep.subr.mxu0 0.0
    %1092 = vmatpush2.msra.mxu0 0.0
    %1093 = vmatprep.subr.mxu0 0.0
    %1094 = vmatpush2.msra.mxu0 0.0
    %1095 = vmatprep.subr.mxu0 0.0
    %1096 = vmatpush2.msra.mxu0 0.0
    %1097 = vmatprep.subr.mxu0 0.0
    %1098 = vmatpush2.msra.mxu0 0.0
    %1099 = vmatprep.subr.mxu0 0.0
    %1100 = vmatpush2.msra.mxu0 0.0
    %1101 = vmatprep.subr.mxu0 0.0
    %1102 = vmatpush2.msra.mxu0 0.0
    %1103 = vmatprep.subr.mxu0 0.0
    %1104 = vmatpush2.msra.mxu0 0.0
    %1105 = vmatprep.subr.mxu0 0.0
    %1106 = vmatpush2.msra.mxu0 0.0
    %1107 = vmatprep.subr.mxu0 0.0
    %1108 = vmatpush2.msra.mxu0 0.0
    %1109 = vmatprep.subr.mxu0 0.0
    %1110 = vmatpush2.msra.mxu0 0.0
    %1111 = vmatprep.subr.mxu0 0.0
    %1112 = vmatpush2.msra.mxu0 0.0
    %1113 = vmatprep.mubr.f32.mxu0 0.0
    %1114 = vmatmul.mubr.f32.gmra.mxu0 %v935
    %v1115 = vpop.f32.mrf.mxu0
    %v1116 = vadd.f32 0.0, %v1115
    %v1117 = vpop.f32.mrf.mxu0
    %1118 = vmatprep.mubr.f32.mxu0 0.0
    %1119 = vmatmul.mubr.f32.gmra.mxu0 %v936
    %v1120 = vpop.f32.mrf.mxu0
    %v1121 = vadd.f32 0.0, %v1120
    %v1122 = vpop.f32.mrf.mxu0
    %1123 = vdwg.mxu0
    %v1124 = vand.u32 2147483647, %v927
    %v1125 = vand.u32 2147483647, %v932
    %v1126 = vmul.f32 %v1124, %v935
    %v1127 = vmul.f32 %v1125, %v936
    %1128 = vmatprep.subr.mxu0 0.0
    %1129 = vmatpush1.msra.mxu0 %v952
    %1130 = vmatprep.subr.mxu0 0.0
    %1131 = vmatpush1.msra.mxu0 %v951
    %1132 = vmatprep.subr.mxu0 0.0
    %1133 = vmatpush1.msra.mxu0 %v950
    %1134 = vmatprep.subr.mxu0 0.0
    %1135 = vmatpush1.msra.mxu0 %v949
    %1136 = vmatprep.subr.mxu0 0.0
    %1137 = vmatpush1.msra.mxu0 %v948
    %1138 = vmatprep.subr.mxu0 0.0
    %1139 = vmatpush1.msra.mxu0 %v947
    %1140 = vmatprep.subr.mxu0 0.0
    %1141 = vmatpush1.msra.mxu0 %v946
    %1142 = vmatprep.subr.mxu0 0.0
    %1143 = vmatpush1.msra.mxu0 %v945
    %1144 = vmatprep.subr.mxu0 0.0
    %1145 = vmatpush1.msra.mxu0 %v944
    %1146 = vmatprep.subr.mxu0 0.0
    %1147 = vmatpush1.msra.mxu0 %v943
    %1148 = vmatprep.subr.mxu0 0.0
    %1149 = vmatpush1.msra.mxu0 %v942
    %1150 = vmatprep.subr.mxu0 0.0
    %1151 = vmatpush1.msra.mxu0 %v941
    %1152 = vmatprep.subr.mxu0 0.0
    %1153 = vmatpush1.msra.mxu0 %v940
    %1154 = vmatprep.subr.mxu0 0.0
    %1155 = vmatpush1.msra.mxu0 %v939
    %1156 = vmatprep.subr.mxu0 0.0
    %1157 = vmatpush1.msra.mxu0 %v938
    %1158 = vmatprep.subr.mxu0 0.0
    %1159 = vmatpush1.msra.mxu0 %v937
    %1160 = vmatprep.subr.mxu0 0.0
    %1161 = vmatpush2.msra.mxu0 0.0
    %1162 = vmatprep.subr.mxu0 0.0
    %1163 = vmatpush2.msra.mxu0 0.0
    %1164 = vmatprep.subr.mxu0 0.0
    %1165 = vmatpush2.msra.mxu0 0.0
    %1166 = vmatprep.subr.mxu0 0.0
    %1167 = vmatpush2.msra.mxu0 0.0
    %1168 = vmatprep.subr.mxu0 0.0
    %1169 = vmatpush2.msra.mxu0 0.0
    %1170 = vmatprep.subr.mxu0 0.0
    %1171 = vmatpush2.msra.mxu0 0.0
    %1172 = vmatprep.subr.mxu0 0.0
    %1173 = vmatpush2.msra.mxu0 0.0
    %1174 = vmatprep.subr.mxu0 0.0
    %1175 = vmatpush2.msra.mxu0 0.0
    %1176 = vmatprep.subr.mxu0 0.0
    %1177 = vmatpush2.msra.mxu0 0.0
    %1178 = vmatprep.subr.mxu0 0.0
    %1179 = vmatpush2.msra.mxu0 0.0
    %1180 = vmatprep.subr.mxu0 0.0
    %1181 = vmatpush2.msra.mxu0 0.0
    %1182 = vmatprep.subr.mxu0 0.0
    %1183 = vmatpush2.msra.mxu0 0.0
    %1184 = vmatprep.subr.mxu0 0.0
    %1185 = vmatpush2.msra.mxu0 0.0
    %1186 = vmatprep.subr.mxu0 0.0
    %1187 = vmatpush2.msra.mxu0 0.0
    %1188 = vmatprep.subr.mxu0 0.0
    %1189 = vmatpush2.msra.mxu0 0.0
    %1190 = vmatprep.subr.mxu0 0.0
    %1191 = vmatpush2.msra.mxu0 0.0
    %1192 = vmatprep.mubr.f32.mxu0 0.0
    %1193 = vmatmul.mubr.f32.gmra.mxu0 %v1126
    %v1194 = vpop.f32.mrf.mxu0
    %v1195 = vadd.f32 0.0, %v1194
    %v1196 = vpop.f32.mrf.mxu0
    %1197 = vmatprep.mubr.f32.mxu0 0.0
    %1198 = vmatmul.mubr.f32.gmra.mxu0 %v1127
    %v1199 = vpop.f32.mrf.mxu0
    %v1200 = vadd.f32 0.0, %v1199
    %v1201 = vpop.f32.mrf.mxu0
    %1202 = vdwg.mxu0
    %v1203 = vsub.f32 0.0, %v1195
    %v1204 = vsub.f32 0.0, %v1200
    %v1205 = vld [vmem:[%s4] sm:$0xff]
    %v1206 = vld [vmem:[%s4 + $0x8] sm:$0xff]
    %v1207 = vmul.f32 %v1203, %v1205
    %v1208 = vmul.f32 %v1204, %v1206
    %v1209 = vmul.f32 %v1207, 1.442695
    %v1210 = vpow.pop %v1209
    %v1211 = vmul.f32 %v1208, 1.442695
    %v1212 = vpow.pop %v1211
    %v1213 = vmul.f32 %v1116, %v1210
    %v1214 = vmul.f32 %v1121, %v1212
    %v1215 = vld [vmem:[%s5] sm:$0xff]
    %v1216 = vld [vmem:[%s5 + $0x8] sm:$0xff]
    %v1217 = vmul.f32 %v1213, %v1215
    %v1218 = vmul.f32 %v1214, %v1216
    %1219 = vst.msk [vmem:[#allocation3] sm:$0xff] %vm297, %v1217
    %1220 = vst.msk [vmem:[#allocation3 + $0x8] sm:$0xff] %vm297, %v1218
    %v1221 = vmul.f32 %v1217, %v1217
    %v1222 = vmul.f32 %v1218, %v1218
    %s1223 = scalar_lea.vmem [#allocation3], 16
    %1224 = vst.msk [vmem:[%s1223] sm:$0xff] %vm297, %v1221
    %1225 = vst.msk [vmem:[%s1223 + $0x8] sm:$0xff] %vm297, %v1222
    %v1226 = vmul.f32 %v1221, %v1217
    %v1227 = vmul.f32 %v1222, %v1218
    %s1228 = scalar_lea.vmem [#allocation3], 32
    %1229 = vst.msk [vmem:[%s1228] sm:$0xff] %vm297, %v1226
    %1230 = vst.msk [vmem:[%s1228 + $0x8] sm:$0xff] %vm297, %v1227
    // Predicated region
    $region58: #{tpu_custom_call.1} parent=1 // pred_check
      _
    $region59: #{tpu_custom_call.1} parent=1 // pred_check_branch
      %1232 = sbr.rel (0) target = $region61
    $region60: #{tpu_custom_call.1} parent=1 // pred_region
      %s1234 = ssub.s32 768, 768
      %1235 = vsyncadd [#allocation4], %s1234
      %s1236 = sshll.u32 [#allocation3], 4
      %s1237 = int_to_ptr.vmem [resolvable:$true] %s1236
      %1242 = dma.vmem_to_hbm [thread:$0]  %s1237, 768, %s14, [#allocation4], 128, 128, 8
    $region61: #{tpu_custom_call.1} parent=1 // pred_fallthru
      _
    // Predicated region
    $region62: #{tpu_custom_call.1} parent=1 // pred_check
      _
    $region63: #{tpu_custom_call.1} parent=1 // pred_check_branch
      %1244 = sbr.rel (0) target = $region65
    $region64: #{tpu_custom_call.1} parent=1 // pred_region
      %1245 = dma.done [#allocation4], 768
    $region65: #{tpu_custom_call.1} parent=1 // pred_fallthru
      _
    %1246 = vsyncpa [#allocation4], 1

</llo_original>
